<compile_context>
chip_gen: v6e
topology: v6e:2x2x1
jax: 0.10.0
libtpu: 0.0.40
codegen_flags: <defaults>
</compile_context>

<pallas_src>
import functools

import jax
import jax.numpy as jnp
from jax.experimental import pallas as pl
from jax.experimental.pallas import tpu as pltpu


def _cdiv(a, b):
    return -(-a // b)


def _round_up(x, m):
    return _cdiv(x, m) * m


def _texture_kernel(uv_ref, tex_ref, xp_ref, yp_ref, o_ref, *, C, R):
    # uv_ref : (1, 2, TP)   normalized coords in [-1, 1]; row 0 = x, row 1 = y
    # tex_ref: (C*R, Kx)    block-diagonal, channel-major flattened pyramid
    # xp_ref : (Kx, 2)      per-column (scale, offset): pix_x = (x+1)*scale
    # yp_ref : (R, 2)       per-row    (scale, offset): pix_y = (y+1)*scale
    # o_ref  : (1, C, TP)
    uv = uv_ref[0]                                  # (2, TP)
    xs = uv[0:1, :] + 1.0                           # (1, TP)  hoisted once
    ys = uv[1:2, :] + 1.0                           # (1, TP)

    xp = xp_ref[...]                                # (Kx, 2)
    yp = yp_ref[...]                                # (R, 2)

    # Separable 1-D bilinear "tent" weights; texels further than 1 pixel away
    # (incl. out-of-bounds) get weight 0 => padding_mode='zeros'.
    wx = jnp.maximum(0.0, 1.0 - jnp.abs(xs * xp[:, 0:1] - xp[:, 1:2]))  # (Kx, TP)
    wy = jnp.maximum(0.0, 1.0 - jnp.abs(ys * yp[:, 0:1] - yp[:, 1:2]))  # (R,  TP)

    # Single MXU contraction over all levels' x-columns.
    a = jnp.dot(tex_ref[...], wx, preferred_element_type=jnp.float32)   # (C*R, TP)

    # y-contraction on the VPU: broadcast wy over channels, reduce over R.
    # R is a multiple of 8, so the reshape is a relayout-free view.
    a = a.reshape(C, R, a.shape[-1]) * wy[None, :, :]
    o_ref[0] = jnp.sum(a, axis=1).astype(o_ref.dtype)                   # (C, TP)


def texture_forward(layers, uv):
    """layers: list of 4 arrays (1, C, H_l, W_l); uv: (B, H_out, W_out, 2) in [-1,1].

    Returns (B, C, H_out, W_out), matching Texture.forward (sum of 4 grid_samples,
    bilinear, align_corners=True, padding_mode='zeros').
    """
    B, H_out, W_out, _ = uv.shape
    C = int(layers[0].shape[1])
    level_dims = tuple((int(l.shape[2]), int(l.shape[3])) for l in layers)
    P = H_out * W_out

    # ---- spatial tiling: TP a multiple of 128 (lane-dense stores), pad P ----
    P128 = _round_up(P, 128)
    n_ptiles = _cdiv(P128, 1024)                # tile only beyond ~1024 pixels
    TP = _round_up(_cdiv(P128, n_ptiles), 128)
    if B == 1 and n_ptiles == 1 and P128 > 128:
        # Keep >=2 parallel grid steps so both v7x TensorCores get work.
        n_ptiles = 2
        TP = _round_up(_cdiv(P128, 2), 128)
    P_pad = TP * n_ptiles

    # uv (B, Ho, Wo, 2) -> (B, 2, P_pad): coords lane-dense along the pixel axis.
    uv_t = jnp.transpose(uv.reshape(B, P, 2), (0, 2, 1)).astype(jnp.float32)
    if P_pad != P:
        uv_t = jnp.pad(uv_t, ((0, 0), (0, 0), (0, P_pad - P)),
                       constant_values=-2.0)    # pad pixels -> zero weights

    # ---- fused block-diagonal texture matrix + tiny (scale, offset) tables ---
    Hsum = sum(h for h, _ in level_dims)
    Wsum = sum(w for _, w in level_dims)
    R = _round_up(Hsum, 8)        # per-channel row count (sublane aligned)
    Kx = _round_up(Wsum, 8)       # MXU contraction dim over all levels' cols

    T = jnp.zeros((C, R, Kx), jnp.float32)
    y_rows, x_cols = [], []
    ro = ko = 0
    for lay, (Hl, Wl) in zip(layers, level_dims):
        T = T.at[:, ro:ro + Hl, ko:ko + Wl].set(lay[0].astype(jnp.float32))
        y_rows += [(0.5 * (Hl - 1), float(r)) for r in range(Hl)]
        x_cols += [(0.5 * (Wl - 1), float(s)) for s in range(Wl)]
        ro += Hl
        ko += Wl
    y_rows += [(0.0, 2.0)] * (R - Hsum)   # dummy rows: weight 0, tex rows 0
    x_cols += [(0.0, 2.0)] * (Kx - Wsum)  # dummy cols: weight 0, tex cols 0

    tex = T.reshape(C * R, Kx)                                 # (C*R, Kx)
    y_params = jnp.array(y_rows, dtype=jnp.float32)            # (R, 2)
    x_params = jnp.array(x_cols, dtype=jnp.float32)            # (Kx, 2)

    kernel = functools.partial(_texture_kernel, C=C, R=R)

    out = pl.pallas_call(
        kernel,
        out_shape=jax.ShapeDtypeStruct((B, C, P_pad), jnp.float32),
        grid_spec=pltpu.PrefetchScalarGridSpec(
            num_scalar_prefetch=0,
            grid=(B, n_ptiles),
            in_specs=[
                pl.BlockSpec((1, 2, TP), lambda b, p: (b, 0, p)),
                pl.BlockSpec((C * R, Kx), lambda b, p: (0, 0)),
                pl.BlockSpec((Kx, 2), lambda b, p: (0, 0)),
                pl.BlockSpec((R, 2), lambda b, p: (0, 0)),
            ],
            out_specs=pl.BlockSpec((1, C, TP), lambda b, p: (b, 0, p)),
        ),
        compiler_params=pltpu.CompilerParams(
            dimension_semantics=("parallel", "parallel")),
    )(uv_t, tex, x_params, y_params)

    if P_pad != P:
        out = out[:, :, :P]
    # (B, C, P) -> (B, C, H_out, W_out): already NCHW, no transpose needed.
    return out.reshape(B, C, H_out, W_out)


# ----------------------------- reference -----------------------------------

def _grid_sample_ref(tex, uv):
    """tex: (C, Ht, Wt); uv: (B, Ho, Wo, 2) -> (B, C, Ho, Wo).

    Bilinear, align_corners=True, padding_mode='zeros' (PyTorch semantics).
    """
    C, Ht, Wt = tex.shape
    x = (uv[..., 0] + 1.0) * (0.5 * (Wt - 1))
    y = (uv[..., 1] + 1.0) * (0.5 * (Ht - 1))
    x0 = jnp.floor(x)
    y0 = jnp.floor(y)
    x1 = x0 + 1.0
    y1 = y0 + 1.0
    wx1 = x - x0
    wx0 = 1.0 - wx1
    wy1 = y - y0
    wy0 = 1.0 - wy1

    def corner(yi, xi):
        inb = (yi >= 0) & (yi <= Ht - 1) & (xi >= 0) & (xi <= Wt - 1)
        yc = jnp.clip(yi, 0, Ht - 1).astype(jnp.int32)
        xc = jnp.clip(xi, 0, Wt - 1).astype(jnp.int32)
        vals = tex[:, yc, xc]                   # (C, B, Ho, Wo)
        return jnp.where(inb[None], vals, 0.0)

    out = (corner(y0, x0) * (wy0 * wx0)[None] +
           corner(y0, x1) * (wy0 * wx1)[None] +
           corner(y1, x0) * (wy1 * wx0)[None] +
           corner(y1, x1) * (wy1 * wx1)[None])
    return jnp.transpose(out, (1, 0, 2, 3))     # (B, C, Ho, Wo)


def _reference(layers, uv):
    out = None
    for lay in layers:
        y = _grid_sample_ref(lay[0], uv)
        out = y if out is None else out + y
    return out


if __name__ == "__main__":
    keys = jax.random.split(jax.random.PRNGKey(0), 5)

    C, H, W = 4, 16, 16            # Texture(N=4, H=16, W=16)
    B, H_out, W_out = 2, 16, 16    # uv grid

    # Module initializes layers to zeros; use random values so the test is
    # meaningful, but keep it deterministic.
    layers = [
        jax.random.normal(keys[i], (1, C, H >> i, W >> i), dtype=jnp.float32)
        for i in range(4)
    ]
    # Slightly outside [-1, 1] to exercise padding_mode='zeros'.
    uv = jax.random.uniform(keys[4], (B, H_out, W_out, 2), jnp.float32,
                            minval=-1.05, maxval=1.05)

    out = texture_forward(layers, uv)
    jax.block_until_ready(out)

    ref = _reference(layers, uv)
    assert out.shape == (B, C, H_out, W_out)
    assert jnp.allclose(out, ref, atol=1e-4, rtol=1e-4)

    print("KERNEL_OK")
</pallas_src>

<mosaic_0001>
module attributes {stable_mosaic.version = 11 : i64} {
  func.func @_texture_kernel(%arg0: i32, %arg1: i32, %arg2: memref<1x2x256xf32, #tpu.memory_space<vmem>>, %arg3: memref<128x32xf32, #tpu.memory_space<vmem>>, %arg4: memref<32x2xf32, #tpu.memory_space<vmem>>, %arg5: memref<32x2xf32, #tpu.memory_space<vmem>>, %arg6: memref<1x4x256xf32, #tpu.memory_space<vmem>>) attributes {dimension_semantics = [#tpu.dimension_semantics<parallel>, #tpu.dimension_semantics<parallel>], iteration_bounds = array<i64: 2, 1>, scalar_prefetch = 0 : i64, scratch_operands = 0 : i64, tpu.core_type = #tpu.core_type<tc>, window_params = [{transform_indices = @transform_0, window_bounds = array<i64: 1, 2, 256>}, {pipeline_mode = #tpu.pipeline_mode<synchronous>, transform_indices = @transform_1, window_bounds = array<i64: 128, 32>}, {pipeline_mode = #tpu.pipeline_mode<synchronous>, transform_indices = @transform_2, window_bounds = array<i64: 32, 2>}, {pipeline_mode = #tpu.pipeline_mode<synchronous>, transform_indices = @transform_3, window_bounds = array<i64: 32, 2>}, {transform_indices = @transform_4, window_bounds = array<i64: 1, 4, 256>}]} {
    %c0 = arith.constant 0 : index
    %c0_0 = arith.constant 0 : index
    %c0_1 = arith.constant 0 : index
    %0 = vector.load %arg2[%c0, %c0_0, %c0_1] : memref<1x2x256xf32, #tpu.memory_space<vmem>>, vector<1x2x256xf32>
    %1 = vector.shape_cast %0 : vector<1x2x256xf32> to vector<2x256xf32>
    %2 = vector.extract_strided_slice %1 {offsets = [0, 0], sizes = [1, 256], strides = [1, 1]} : vector<2x256xf32> to vector<1x256xf32>
    %cst = arith.constant 1.000000e+00 : f32
    %3 = vector.broadcast %cst : f32 to vector<1x256xf32>
    %4 = arith.addf %2, %3 : vector<1x256xf32>
    %5 = vector.extract_strided_slice %1 {offsets = [1, 0], sizes = [1, 256], strides = [1, 1]} : vector<2x256xf32> to vector<1x256xf32>
    %cst_2 = arith.constant 1.000000e+00 : f32
    %6 = vector.broadcast %cst_2 : f32 to vector<1x256xf32>
    %7 = arith.addf %5, %6 : vector<1x256xf32>
    %c0_3 = arith.constant 0 : index
    %c0_4 = arith.constant 0 : index
    %8 = vector.load %arg4[%c0_3, %c0_4] : memref<32x2xf32, #tpu.memory_space<vmem>>, vector<32x2xf32>
    %c0_5 = arith.constant 0 : index
    %c0_6 = arith.constant 0 : index
    %9 = vector.load %arg5[%c0_5, %c0_6] : memref<32x2xf32, #tpu.memory_space<vmem>>, vector<32x2xf32>
    %10 = vector.extract_strided_slice %8 {offsets = [0, 0], sizes = [32, 1], strides = [1, 1]} : vector<32x2xf32> to vector<32x1xf32>
    %11 = vector.broadcast %4 : vector<1x256xf32> to vector<32x256xf32>
    %12 = vector.broadcast %10 : vector<32x1xf32> to vector<32x256xf32>
    %13 = arith.mulf %11, %12 : vector<32x256xf32>
    %14 = vector.extract_strided_slice %8 {offsets = [0, 1], sizes = [32, 1], strides = [1, 1]} : vector<32x2xf32> to vector<32x1xf32>
    %15 = vector.broadcast %14 : vector<32x1xf32> to vector<32x256xf32>
    %16 = arith.subf %13, %15 : vector<32x256xf32>
    %17 = math.absf %16 : vector<32x256xf32>
    %cst_7 = arith.constant 1.000000e+00 : f32
    %18 = vector.broadcast %cst_7 : f32 to vector<32x256xf32>
    %19 = arith.subf %18, %17 : vector<32x256xf32>
    %cst_8 = arith.constant 0.000000e+00 : f32
    %20 = vector.broadcast %cst_8 : f32 to vector<32x256xf32>
    %21 = arith.maximumf %20, %19 : vector<32x256xf32>
    %22 = vector.extract_strided_slice %9 {offsets = [0, 0], sizes = [32, 1], strides = [1, 1]} : vector<32x2xf32> to vector<32x1xf32>
    %23 = vector.broadcast %7 : vector<1x256xf32> to vector<32x256xf32>
    %24 = vector.broadcast %22 : vector<32x1xf32> to vector<32x256xf32>
    %25 = arith.mulf %23, %24 : vector<32x256xf32>
    %26 = vector.extract_strided_slice %9 {offsets = [0, 1], sizes = [32, 1], strides = [1, 1]} : vector<32x2xf32> to vector<32x1xf32>
    %27 = vector.broadcast %26 : vector<32x1xf32> to vector<32x256xf32>
    %28 = arith.subf %25, %27 : vector<32x256xf32>
    %29 = math.absf %28 : vector<32x256xf32>
    %cst_9 = arith.constant 1.000000e+00 : f32
    %30 = vector.broadcast %cst_9 : f32 to vector<32x256xf32>
    %31 = arith.subf %30, %29 : vector<32x256xf32>
    %cst_10 = arith.constant 0.000000e+00 : f32
    %32 = vector.broadcast %cst_10 : f32 to vector<32x256xf32>
    %33 = arith.maximumf %32, %31 : vector<32x256xf32>
    %c0_11 = arith.constant 0 : index
    %c0_12 = arith.constant 0 : index
    %34 = vector.load %arg3[%c0_11, %c0_12] : memref<128x32xf32, #tpu.memory_space<vmem>>, vector<128x32xf32>
    %cst_13 = arith.constant dense<0.000000e+00> : vector<128x256xf32>
    %35 = tpu.matmul %34, %21, %cst_13 {dimension_numbers = #tpu.dot_dimension_numbers<[1], [0], [0], [1], [0, 0, 1, 1], [], []>} : vector<128x32xf32>, vector<32x256xf32>, vector<128x256xf32> -> vector<128x256xf32>
    %36 = vector.shape_cast %35 : vector<128x256xf32> to vector<4x32x256xf32>
    %37 = vector.shape_cast %33 : vector<32x256xf32> to vector<1x32x256xf32>
    %38 = vector.broadcast %37 : vector<1x32x256xf32> to vector<4x32x256xf32>
    %39 = arith.mulf %36, %38 : vector<4x32x256xf32>
    %cst_14 = arith.constant dense<0.000000e+00> : vector<4x256xf32>
    %40 = vector.multi_reduction <add>, %39, %cst_14 [1] : vector<4x32x256xf32> to vector<4x256xf32>
    %c0_15 = arith.constant 0 : index
    %c0_16 = arith.constant 0 : index
    %c0_17 = arith.constant 0 : index
    %41 = vector.load %arg6[%c0_15, %c0_16, %c0_17] : memref<1x4x256xf32, #tpu.memory_space<vmem>>, vector<1x4x256xf32>
    %42 = vector.shape_cast %41 : vector<1x4x256xf32> to vector<4x256xf32>
    %43 = vector.shape_cast %40 : vector<4x256xf32> to vector<1x4x256xf32>
    tpu.vector_store %arg6[%c0_15, %c0_16, %c0_17], %43 {strides = array<i32>} : memref<1x4x256xf32, #tpu.memory_space<vmem>>, vector<1x4x256xf32>,
    return
  }
  func.func @transform_0(%arg0: i32, %arg1: i32) -> (i32, i32, i32) {
    %c0_i32 = arith.constant 0 : i32
    %c0_i32_0 = arith.constant 0 : i32
    return %arg0, %c0_i32, %arg1 : i32, i32, i32
  }
  func.func @transform_1(%arg0: i32, %arg1: i32) -> (i32, i32) {
    %c0_i32 = arith.constant 0 : i32
    %c0_i32_0 = arith.constant 0 : i32
    %c0_i32_1 = arith.constant 0 : i32
    return %c0_i32, %c0_i32_0 : i32, i32
  }
  func.func @transform_2(%arg0: i32, %arg1: i32) -> (i32, i32) {
    %c0_i32 = arith.constant 0 : i32
    %c0_i32_0 = arith.constant 0 : i32
    %c0_i32_1 = arith.constant 0 : i32
    return %c0_i32, %c0_i32_0 : i32, i32
  }
  func.func @transform_3(%arg0: i32, %arg1: i32) -> (i32, i32) {
    %c0_i32 = arith.constant 0 : i32
    %c0_i32_0 = arith.constant 0 : i32
    %c0_i32_1 = arith.constant 0 : i32
    return %c0_i32, %c0_i32_0 : i32, i32
  }
  func.func @transform_4(%arg0: i32, %arg1: i32) -> (i32, i32, i32) {
    %c0_i32 = arith.constant 0 : i32
    %c0_i32_0 = arith.constant 0 : i32
    return %arg0, %c0_i32, %arg1 : i32, i32, i32
  }
}

</mosaic_0001>

<llo_original>
// kernel: tpu_custom_call.1
$region0: #{tpu_custom_call.1}
  #allocation0 [shape = 'u32[]', space=smem, size = 0x4, offset = 0x4, fixed_abs, tag = 'smem constant byte address 0x4 - core index']
  #allocation1 [shape = 'u32[144,128]{1,0:T(1,128)}', space=vmem, size = 0x12000, scoped, tag = 'internal scratch']
  %s0 = inlined_call_operand.vmem [shape: f32[2,2,256], index: 0, kind: input, shape index: {}]
  %s1 = inlined_call_operand.vmem [shape: f32[128,32], index: 1, kind: input, shape index: {}]
  %s2 = inlined_call_operand.vmem [shape: f32[32,2], index: 2, kind: input, shape index: {}]
  %s3 = inlined_call_operand.vmem [shape: f32[32,2], index: 3, kind: input, shape index: {}]
  %s4 = inlined_call_operand.hbm [shape: f32[2,4,256], index: 4, kind: output, shape index: {}]
  %s5 = sld [smem:[#allocation0]]
  $region49: #{tpu_custom_call.1} parent=0
    _
  %s7 = ssub.s32 1, %s5
  %s8 = scalar_select 0, %s7, %s5
  $region1: #{tpu_custom_call.1} parent=0
    #allocation2 [shape = 'u8[8192]{0}', space=vmem, size = 0x2000, scoped, tag = 'output window, operand 0']
    #allocation3 [shape = 's32[2]{0}', space=sflag, size = 0x8, scoped, tag = 'scoped memory for tpu_custom_call.1']
    %9 = vsyncpa [#allocation3], 0
    %s10 = scalar_lea.sflag [#allocation3], 1
    %11 = vsyncpa %s10, 0
    loop: start=0, step=1, limit=4
    $region2: #{tpu_custom_call.1} parent=1 // loop_pre_header
      _
    $region3: #{tpu_custom_call.1} parent=1 // loop_header
      %s13 = sphi 0, %s17
      %p14 = scmp.ge.s32.totalorder %s13, 4
      %s20 = sphi 0, %s32
      %s21 = sphi 0, %s28
      %s22 = sphi 0, %s20
      %s23 = sphi 0, %s21
      %s24 = sphi 0, %s22
      %s25 = sphi 0, %s23
      %s37 = sphi 0, %s39
      %s40 = sphi 0, %s37
      %s41 = sphi 0, %s40
      %s57 = sphi 0, %s41
      %s61 = sphi 0, %s61
      %s63 = sphi 0, %s61
      %s64 = sphi 0, %s63
      %s78 = sphi 0, %s64
      %s82 = sphi 0, %s82
      %s84 = sphi 0, %s82
      %s85 = sphi 0, %s84
      %s99 = sphi 0, %s85
      %s103 = sphi 0, %s103
      %s105 = sphi 0, %s103
      %s106 = sphi 0, %s105
      %s120 = sphi 0, %s106
      %s128 = sphi 0, %s130
      %s131 = sphi 0, %s128
      %s132 = sphi 0, %s131
      %s148 = sphi 0, %s132
    $region4: #{tpu_custom_call.1} parent=1 // loop_header_branch
      %16 = sbr.rel (%p14) target = $region8
    $region5: #{tpu_custom_call.1} parent=1 // loop_body
      %s18 = ssub.s32 %s13, 1
      %s19 = ssub.s32 %s13, 2
      %s26 = sadd.s32 1, %s21
      %p27 = scmp.ge.s32.totalorder %s26, 1
      %s28 = scalar_select %p27, 0, %s26
      %s29 = sadd.s32 1, %s20
      %s30 = scalar_select %p27, %s29, %s20
      %p31 = scmp.ge.s32.totalorder %s30, 2
      %s32 = scalar_select %p31, 0, %s30
      %s33 = ssub.s32 %s20, %s32
      %s34 = ssub.s32 %s21, %s28
      %s35 = sor.u32 %s33, %s34
      %p36 = scmp.eq.s32.totalorder %s35, 0
      %s38 = sadd.s32 %s37, 1
      %s39 = scalar_select %p36, %s37, %s38
      %p42 = pneg %p36
      %p43 = scmp.eq.s32.totalorder %s13, 1
      %p44 = por %p42, %p43
      %p45 = scmp.ne.s32.totalorder %s37, %s40
      %p46 = scmp.eq.s32.totalorder %s13, 0
      %p47 = por %p45, %p46
      %p48 = scmp.ne.s32.totalorder %s37, %s40
      %p49 = scmp.eq.s32.totalorder %s18, 1
      %p50 = por %p48, %p49
      %p51 = scmp.ne.s32.totalorder %s40, %s41
      %p52 = scmp.eq.s32.totalorder %s18, 0
      %p53 = por %p51, %p52
      %p54 = scmp.ne.s32.totalorder %s40, %s41
      %p55 = scmp.eq.s32.totalorder %s19, 1
      %p56 = por %p54, %p55
      %p58 = scmp.ne.s32.totalorder %s41, %s57
      %p59 = scmp.eq.s32.totalorder %s19, 0
      %p60 = por %p58, %p59
      %s62 = sadd.s32 %s61, 1
      %p65 = scmp.eq.s32.totalorder %s13, 1
      %p66 = scmp.ne.s32.totalorder %s61, %s63
      %p67 = scmp.eq.s32.totalorder %s13, 0
      %p68 = por %p66, %p67
      %p69 = scmp.ne.s32.totalorder %s61, %s63
      %p70 = scmp.eq.s32.totalorder %s18, 1
      %p71 = por %p69, %p70
      %p72 = scmp.ne.s32.totalorder %s63, %s64
      %p73 = scmp.eq.s32.totalorder %s18, 0
      %p74 = por %p72, %p73
      %p75 = scmp.ne.s32.totalorder %s63, %s64
      %p76 = scmp.eq.s32.totalorder %s19, 1
      %p77 = por %p75, %p76
      %p79 = scmp.ne.s32.totalorder %s64, %s78
      %p80 = scmp.eq.s32.totalorder %s19, 0
      %p81 = por %p79, %p80
      %s83 = sadd.s32 %s82, 1
      %p86 = scmp.eq.s32.totalorder %s13, 1
      %p87 = scmp.ne.s32.totalorder %s82, %s84
      %p88 = scmp.eq.s32.totalorder %s13, 0
      %p89 = por %p87, %p88
      %p90 = scmp.ne.s32.totalorder %s82, %s84
      %p91 = scmp.eq.s32.totalorder %s18, 1
      %p92 = por %p90, %p91
      %p93 = scmp.ne.s32.totalorder %s84, %s85
      %p94 = scmp.eq.s32.totalorder %s18, 0
      %p95 = por %p93, %p94
      %p96 = scmp.ne.s32.totalorder %s84, %s85
      %p97 = scmp.eq.s32.totalorder %s19, 1
      %p98 = por %p96, %p97
      %p100 = scmp.ne.s32.totalorder %s85, %s99
      %p101 = scmp.eq.s32.totalorder %s19, 0
      %p102 = por %p100, %p101
      %s104 = sadd.s32 %s103, 1
      %p107 = scmp.eq.s32.totalorder %s13, 1
      %p108 = scmp.ne.s32.totalorder %s103, %s105
      %p109 = scmp.eq.s32.totalorder %s13, 0
      %p110 = por %p108, %p109
      %p111 = scmp.ne.s32.totalorder %s103, %s105
      %p112 = scmp.eq.s32.totalorder %s18, 1
      %p113 = por %p111, %p112
      %p114 = scmp.ne.s32.totalorder %s105, %s106
      %p115 = scmp.eq.s32.totalorder %s18, 0
      %p116 = por %p114, %p115
      %p117 = scmp.ne.s32.totalorder %s105, %s106
      %p118 = scmp.eq.s32.totalorder %s19, 1
      %p119 = por %p117, %p118
      %p121 = scmp.ne.s32.totalorder %s106, %s120
      %p122 = scmp.eq.s32.totalorder %s19, 0
      %p123 = por %p121, %p122
      %s124 = ssub.s32 %s20, %s32
      %s125 = ssub.s32 %s21, %s28
      %s126 = sor.u32 %s124, %s125
      %p127 = scmp.eq.s32.totalorder %s126, 0
      %s129 = sadd.s32 %s128, 1
      %s130 = scalar_select %p127, %s128, %s129
      %p133 = pneg %p127
      %p134 = scmp.eq.s32.totalorder %s13, 1
      %p135 = por %p133, %p134
      %p136 = scmp.ne.s32.totalorder %s128, %s131
      %p137 = scmp.eq.s32.totalorder %s13, 0
      %p138 = por %p136, %p137
      %p139 = scmp.ne.s32.totalorder %s128, %s131
      %p140 = scmp.eq.s32.totalorder %s18, 1
      %p141 = por %p139, %p140
      %p142 = scmp.ne.s32.totalorder %s131, %s132
      %p143 = scmp.eq.s32.totalorder %s18, 0
      %p144 = por %p142, %p143
      %p145 = scmp.ne.s32.totalorder %s131, %s132
      %p146 = scmp.eq.s32.totalorder %s19, 1
      %p147 = por %p145, %p146
      %p149 = scmp.ne.s32.totalorder %s132, %s148
      %p150 = scmp.eq.s32.totalorder %s19, 0
      %p151 = por %p149, %p150
      %p152 = scmp.le.s32.totalorder 1, %s13
      %p153 = scmp.lt.s32.totalorder %s13, 3
      %p154 = pnand %p152, %p153
      %p155 = pneg %p154
      // Predicated region
      $region9: #{tpu_custom_call.1} parent=5 // pred_check
        _
      $region10: #{tpu_custom_call.1} parent=5 // pred_check_branch
        %157 = sbr.rel (%p154) target = $region12
      $region11: #{tpu_custom_call.1} parent=5 // pred_region
        %s158 = ssub.s32 %s13, 1
        // Predicated region
        $region13: #{tpu_custom_call.1} parent=11 // pred_check
          %p159 = pneg %p74
        $region14: #{tpu_custom_call.1} parent=11 // pred_check_branch
          %161 = sbr.rel (%p159) target = $region16
        $region15: #{tpu_custom_call.1} parent=11 // pred_region
          _
        $region16: #{tpu_custom_call.1} parent=11 // pred_fallthru
          _
        // Predicated region
        $region17: #{tpu_custom_call.1} parent=11 // pred_check
          %p162 = pneg %p95
        $region18: #{tpu_custom_call.1} parent=11 // pred_check_branch
          %164 = sbr.rel (%p162) target = $region20
        $region19: #{tpu_custom_call.1} parent=11 // pred_region
          _
        $region20: #{tpu_custom_call.1} parent=11 // pred_fallthru
          _
        // Predicated region
        $region21: #{tpu_custom_call.1} parent=11 // pred_check
          %p165 = pneg %p116
        $region22: #{tpu_custom_call.1} parent=11 // pred_check_branch
          %167 = sbr.rel (%p165) target = $region24
        $region23: #{tpu_custom_call.1} parent=11 // pred_region
          _
        $region24: #{tpu_custom_call.1} parent=11 // pred_fallthru
          _
      $region12: #{tpu_custom_call.1} parent=5 // pred_fallthru
        _
      %p168 = scmp.lt.s32.totalorder %s13, 2
      // Predicated region
      $region25: #{tpu_custom_call.1} parent=5 // pred_check
        %p169 = pneg %p168
      $region26: #{tpu_custom_call.1} parent=5 // pred_check_branch
        %171 = sbr.rel (%p169) target = $region28
      $region27: #{tpu_custom_call.1} parent=5 // pred_region
        // Predicated region
        $region29: #{tpu_custom_call.1} parent=27 // pred_check
          %p172 = pneg %p47
        $region30: #{tpu_custom_call.1} parent=27 // pred_check_branch
          %174 = sbr.rel (%p172) target = $region32
        $region31: #{tpu_custom_call.1} parent=27 // pred_region
          %s175 = smul.u32 2, %s21
          %p176 = scmp.lt.s32.totalorder %s20, 1
          %s177 = scalar_select %p176, %s20, 1
          %p178 = scmp.lt.s32.totalorder %s175, 1
          %s179 = scalar_select %p178, %s175, 1
          %s180 = smul.addr %s177, 2
          %s181 = sadd.s32 %s179, %s180
          %s182 = smul.addr %s181, 2
          %s183 = scalar_lea.vmem %s0, %s182
          %s184 = smul.u32 2, %s21
        $region32: #{tpu_custom_call.1} parent=27 // pred_fallthru
          _
      $region28: #{tpu_custom_call.1} parent=5 // pred_fallthru
        _
      %p185 = scmp.le.s32.totalorder 1, %s13
      %p186 = scmp.lt.s32.totalorder %s13, 3
      %p187 = pnand %p185, %p186
      %p188 = pneg %p187
      // Predicated region
      $region33: #{tpu_custom_call.1} parent=5 // pred_check
        _
      $region34: #{tpu_custom_call.1} parent=5 // pred_check_branch
        %190 = sbr.rel (%p187) target = $region36
      $region35: #{tpu_custom_call.1} parent=5 // pred_region
        %s191 = ssub.s32 %s13, 1
        %s192 = smul.u32 2, %s23
        %p193 = scmp.lt.s32.totalorder %s22, 1
        %s194 = scalar_select %p193, %s22, 1
        %p195 = scmp.lt.s32.totalorder %s192, 1
        %s196 = scalar_select %p195, %s192, 1
        %s197 = smul.addr %s194, 2
        %s198 = sadd.s32 %s196, %s197
        %s199 = smul.addr %s198, 2
        %s200 = scalar_lea.vmem %s0, %s199
        %p201 = pneg %p53
        %p202 = pneg %p50
        %p203 = pneg %p74
        %p204 = pneg %p71
        %p205 = pneg %p95
        %p206 = pneg %p92
        %p207 = pneg %p116
        %p208 = pneg %p113
        %p209 = pneg %p144
        %p210 = pneg %p141
        %s211 = sand.u32 %s131, 1
        %s212 = scalar_lea.sflag [#allocation3], %s211
        %s213 = sand.u32 %s131, 1
        %s214 = smul.addr %s213, 8
        %s215 = scalar_lea.vmem [#allocation2], %s214
        %s216 = smul.u32 2, %s23
        %p217 = scmp.lt.s32.totalorder %s22, 1
        %s218 = scalar_select %p217, %s22, 1
        %p219 = scmp.lt.s32.totalorder %s216, 1
        %s220 = scalar_select %p219, %s216, 1
        %s221 = smul.addr %s218, 2
        %s222 = sadd.s32 %s220, %s221
        %s223 = smul.addr %s222, 2
        %s224 = scalar_lea.vmem %s0, %s223
        %s225 = smul.u32 2, %s23
        %s226 = smul.u32 2, %s23
        %v227 = vld [vmem:[%s224] sm:$0xf]
        %v228 = vadd.f32 %v227, 1.0
        %v229 = vld [vmem:[%s2] sm:$0xff]
        %v230 = vld [vmem:[%s2 + $0x8] sm:$0xff]
        %v231 = vld [vmem:[%s2 + $0x10] sm:$0xff]
        %v232 = vld [vmem:[%s2 + $0x18] sm:$0xff]
        %v233 = vld [vmem:[%s3] sm:$0xff]
        %v234 = vld [vmem:[%s3 + $0x8] sm:$0xff]
        %v235 = vld [vmem:[%s3 + $0x10] sm:$0xff]
        %v236 = vld [vmem:[%s3 + $0x18] sm:$0xff]
        %v238 = vlaneseq
        %v239 = vshrl.u32 %v238, 7
        %v240 = vsub.s32 0, %v239
        %v241 = vrot.slane %v228, %v240
        %v242 = vlaneseq
        %v243 = vshrl.u32 %v242, 7
        %v244 = vsub.s32 2, %v243
        %v245 = vrot.slane %v228, %v244
        %v248 = vlaneseq
        %v249 = vshrl.u32 %v248, 7
        %v250 = vsub.s32 0, %v249
        %v251 = vrot.slane %v241, %v250
        %v252 = vlaneseq
        %v253 = vshrl.u32 %v252, 7
        %v254 = vsub.s32 0, %v253
        %v255 = vrot.slane %v245, %v254
        %257 = vset.pattern.permute.xlu0 0
        %258 = vperm.xlu0 %257, %v229
        %v259 = vpop.permute.xlu0 %258
        %262 = vset.pattern.permute.xlu0 0
        %263 = vperm.xlu0 %262, %v230
        %v264 = vpop.permute.xlu0 %263
        %267 = vset.pattern.permute.xlu0 0
        %268 = vperm.xlu0 %267, %v231
        %v269 = vpop.permute.xlu0 %268
        %272 = vset.pattern.permute.xlu0 0
        %273 = vperm.xlu0 %272, %v232
        %v274 = vpop.permute.xlu0 %273
        %v276 = vmul.f32 %v251, %v259
        %v277 = vmul.f32 %v255, %v259
        %v278 = vmul.f32 %v251, %v264
        %v279 = vmul.f32 %v255, %v264
        %v280 = vmul.f32 %v251, %v269
        %v281 = vmul.f32 %v255, %v269
        %v282 = vmul.f32 %v251, %v274
        %v283 = vmul.f32 %v255, %v274
        %284 = vset.pattern.permute.xlu0 1
        %285 = vperm.xlu0 %284, %v229
        %v286 = vpop.permute.xlu0 %285
        %288 = vset.pattern.permute.xlu0 1
        %289 = vperm.xlu0 %288, %v230
        %v290 = vpop.permute.xlu0 %289
        %292 = vset.pattern.permute.xlu0 1
        %293 = vperm.xlu0 %292, %v231
        %v294 = vpop.permute.xlu0 %293
        %296 = vset.pattern.permute.xlu0 1
        %297 = vperm.xlu0 %296, %v232
        %v298 = vpop.permute.xlu0 %297
        %v300 = vsub.f32 %v276, %v286
        %v301 = vsub.f32 %v277, %v286
        %v302 = vsub.f32 %v278, %v290
        %v303 = vsub.f32 %v279, %v290
        %v304 = vsub.f32 %v280, %v294
        %v305 = vsub.f32 %v281, %v294
        %v306 = vsub.f32 %v282, %v298
        %v307 = vsub.f32 %v283, %v298
        %v308 = vand.u32 2147483647, %v300
        %v309 = vand.u32 2147483647, %v301
        %v310 = vand.u32 2147483647, %v302
        %v311 = vand.u32 2147483647, %v303
        %v312 = vand.u32 2147483647, %v304
        %v313 = vand.u32 2147483647, %v305
        %v314 = vand.u32 2147483647, %v306
        %v315 = vand.u32 2147483647, %v307
        %v316 = vsub.f32 1.0, %v308
        %v317 = vsub.f32 1.0, %v309
        %v318 = vsub.f32 1.0, %v310
        %v319 = vsub.f32 1.0, %v311
        %v320 = vsub.f32 1.0, %v312
        %v321 = vsub.f32 1.0, %v313
        %v322 = vsub.f32 1.0, %v314
        %v323 = vsub.f32 1.0, %v315
        %v324 = vmax.f32 %v316, 0.0
        %v325 = vmax.f32 %v317, 0.0
        %v326 = vmax.f32 %v318, 0.0
        %v327 = vmax.f32 %v319, 0.0
        %v328 = vmax.f32 %v320, 0.0
        %v329 = vmax.f32 %v321, 0.0
        %v330 = vmax.f32 %v322, 0.0
        %v331 = vmax.f32 %v323, 0.0
        %v332 = vlaneseq
        %v333 = vshrl.u32 %v332, 7
        %v334 = vsub.s32 1, %v333
        %v335 = vrot.slane %v228, %v334
        %v336 = vlaneseq
        %v337 = vshrl.u32 %v336, 7
        %v338 = vsub.s32 3, %v337
        %v339 = vrot.slane %v228, %v338
        %v342 = vlaneseq
        %v343 = vshrl.u32 %v342, 7
        %v344 = vsub.s32 1, %v343
        %v345 = vrot.slane %v335, %v344
        %v346 = vlaneseq
        %v347 = vshrl.u32 %v346, 7
        %v348 = vsub.s32 1, %v347
        %v349 = vrot.slane %v339, %v348
        %351 = vset.pattern.permute.xlu0 0
        %352 = vperm.xlu0 %351, %v233
        %v353 = vpop.permute.xlu0 %352
        %356 = vset.pattern.permute.xlu0 0
        %357 = vperm.xlu0 %356, %v234
        %v358 = vpop.permute.xlu0 %357
        %361 = vset.pattern.permute.xlu0 0
        %362 = vperm.xlu0 %361, %v235
        %v363 = vpop.permute.xlu0 %362
        %366 = vset.pattern.permute.xlu0 0
        %367 = vperm.xlu0 %366, %v236
        %v368 = vpop.permute.xlu0 %367
        %v370 = vmul.f32 %v345, %v353
        %v371 = vmul.f32 %v349, %v353
        %v372 = vmul.f32 %v345, %v358
        %v373 = vmul.f32 %v349, %v358
        %v374 = vmul.f32 %v345, %v363
        %v375 = vmul.f32 %v349, %v363
        %v376 = vmul.f32 %v345, %v368
        %v377 = vmul.f32 %v349, %v368
        %378 = vset.pattern.permute.xlu0 1
        %379 = vperm.xlu0 %378, %v233
        %v380 = vpop.permute.xlu0 %379
        %382 = vset.pattern.permute.xlu0 1
        %383 = vperm.xlu0 %382, %v234
        %v384 = vpop.permute.xlu0 %383
        %386 = vset.pattern.permute.xlu0 1
        %387 = vperm.xlu0 %386, %v235
        %v388 = vpop.permute.xlu0 %387
        %390 = vset.pattern.permute.xlu0 1
        %391 = vperm.xlu0 %390, %v236
        %v392 = vpop.permute.xlu0 %391
        %v394 = vsub.f32 %v370, %v380
        %v395 = vsub.f32 %v371, %v380
        %v396 = vsub.f32 %v372, %v384
        %v397 = vsub.f32 %v373, %v384
        %v398 = vsub.f32 %v374, %v388
        %v399 = vsub.f32 %v375, %v388
        %v400 = vsub.f32 %v376, %v392
        %v401 = vsub.f32 %v377, %v392
        %v402 = vand.u32 2147483647, %v394
        %v403 = vand.u32 2147483647, %v395
        %v404 = vand.u32 2147483647, %v396
        %v405 = vand.u32 2147483647, %v397
        %v406 = vand.u32 2147483647, %v398
        %v407 = vand.u32 2147483647, %v399
        %v408 = vand.u32 2147483647, %v400
        %v409 = vand.u32 2147483647, %v401
        %v410 = vsub.f32 1.0, %v402
        %v411 = vsub.f32 1.0, %v403
        %v412 = vsub.f32 1.0, %v404
        %v413 = vsub.f32 1.0, %v405
        %v414 = vsub.f32 1.0, %v406
        %v415 = vsub.f32 1.0, %v407
        %v416 = vsub.f32 1.0, %v408
        %v417 = vsub.f32 1.0, %v409
        %v418 = vmax.f32 %v410, 0.0
        %v419 = vmax.f32 %v411, 0.0
        %v420 = vmax.f32 %v412, 0.0
        %v421 = vmax.f32 %v413, 0.0
        %v422 = vmax.f32 %v414, 0.0
        %v423 = vmax.f32 %v415, 0.0
        %v424 = vmax.f32 %v416, 0.0
        %v425 = vmax.f32 %v417, 0.0
        %v426 = vld [vmem:[%s1] sm:$0xff]
        %v427 = vld [vmem:[%s1 + $0x8] sm:$0xff]
        %v428 = vld [vmem:[%s1 + $0x10] sm:$0xff]
        %v429 = vld [vmem:[%s1 + $0x18] sm:$0xff]
        %v430 = vld [vmem:[%s1 + $0x20] sm:$0xff]
        %v431 = vld [vmem:[%s1 + $0x28] sm:$0xff]
        %v432 = vld [vmem:[%s1 + $0x30] sm:$0xff]
        %v433 = vld [vmem:[%s1 + $0x38] sm:$0xff]
        %v434 = vld [vmem:[%s1 + $0x40] sm:$0xff]
        %v435 = vld [vmem:[%s1 + $0x48] sm:$0xff]
        %v436 = vld [vmem:[%s1 + $0x50] sm:$0xff]
        %v437 = vld [vmem:[%s1 + $0x58] sm:$0xff]
        %v438 = vld [vmem:[%s1 + $0x60] sm:$0xff]
        %v439 = vld [vmem:[%s1 + $0x68] sm:$0xff]
        %v440 = vld [vmem:[%s1 + $0x70] sm:$0xff]
        %v441 = vld [vmem:[%s1 + $0x78] sm:$0xff]
        %vm442 = vcmask 261120
        %v444 = vsel %vm442, %v426, 0
        %v447 = vsel %vm442, %v427, 0
        %v450 = vsel %vm442, %v428, 0
        %v453 = vsel %vm442, %v429, 0
        %v456 = vsel %vm442, %v430, 0
        %v459 = vsel %vm442, %v431, 0
        %v462 = vsel %vm442, %v432, 0
        %v465 = vsel %vm442, %v433, 0
        %v468 = vsel %vm442, %v434, 0
        %v471 = vsel %vm442, %v435, 0
        %v474 = vsel %vm442, %v436, 0
        %v477 = vsel %vm442, %v437, 0
        %v480 = vsel %vm442, %v438, 0
        %v483 = vsel %vm442, %v439, 0
        %v486 = vsel %vm442, %v440, 0
        %v489 = vsel %vm442, %v441, 0
        %491 = vmatprep.subr.mxu0 0.0
        %492 = vmatpush1.msra.mxu0 0.0
        %493 = vmatprep.subr.mxu0 0.0
        %494 = vmatpush1.msra.mxu0 0.0
        %495 = vmatprep.subr.mxu0 0.0
        %496 = vmatpush1.msra.mxu0 0.0
        %497 = vmatprep.subr.mxu0 0.0
        %498 = vmatpush1.msra.mxu0 0.0
        %499 = vmatprep.subr.mxu0 0.0
        %500 = vmatpush1.msra.mxu0 0.0
        %501 = vmatprep.subr.mxu0 0.0
        %502 = vmatpush1.msra.mxu0 0.0
        %503 = vmatprep.subr.mxu0 0.0
        %504 = vmatpush1.msra.mxu0 0.0
        %505 = vmatprep.subr.mxu0 0.0
        %506 = vmatpush1.msra.mxu0 0.0
        %507 = vmatprep.subr.mxu0 0.0
        %508 = vmatpush1.msra.mxu0 0.0
        %509 = vmatprep.subr.mxu0 0.0
        %510 = vmatpush1.msra.mxu0 0.0
        %511 = vmatprep.subr.mxu0 0.0
        %512 = vmatpush1.msra.mxu0 0.0
        %513 = vmatprep.subr.mxu0 0.0
        %514 = vmatpush1.msra.mxu0 0.0
        %515 = vmatprep.subr.mxu0 %v331
        %516 = vmatpush1.msra.mxu0 %v330
        %517 = vmatprep.subr.mxu0 %v329
        %518 = vmatpush1.msra.mxu0 %v328
        %519 = vmatprep.subr.mxu0 %v327
        %520 = vmatpush1.msra.mxu0 %v326
        %521 = vmatprep.subr.mxu0 %v325
        %522 = vmatpush1.msra.mxu0 %v324
        %523 = vmatprep.subr.mxu0 0.0
        %524 = vmatpush2.msra.mxu0 0.0
        %525 = vmatprep.subr.mxu0 0.0
        %526 = vmatpush2.msra.mxu0 0.0
        %527 = vmatprep.subr.mxu0 0.0
        %528 = vmatpush2.msra.mxu0 0.0
        %529 = vmatprep.subr.mxu0 0.0
        %530 = vmatpush2.msra.mxu0 0.0
        %531 = vmatprep.subr.mxu0 0.0
        %532 = vmatpush2.msra.mxu0 0.0
        %533 = vmatprep.subr.mxu0 0.0
        %534 = vmatpush2.msra.mxu0 0.0
        %535 = vmatprep.subr.mxu0 0.0
        %536 = vmatpush2.msra.mxu0 0.0
        %537 = vmatprep.subr.mxu0 0.0
        %538 = vmatpush2.msra.mxu0 0.0
        %539 = vmatprep.subr.mxu0 0.0
        %540 = vmatpush2.msra.mxu0 0.0
        %541 = vmatprep.subr.mxu0 0.0
        %542 = vmatpush2.msra.mxu0 0.0
        %543 = vmatprep.subr.mxu0 0.0
        %544 = vmatpush2.msra.mxu0 0.0
        %545 = vmatprep.subr.mxu0 0.0
        %546 = vmatpush2.msra.mxu0 0.0
        %547 = vmatprep.subr.mxu0 0.0
        %548 = vmatpush2.msra.mxu0 0.0
        %549 = vmatprep.subr.mxu0 0.0
        %550 = vmatpush2.msra.mxu0 0.0
        %551 = vmatprep.subr.mxu0 0.0
        %552 = vmatpush2.msra.mxu0 0.0
        %553 = vmatprep.subr.mxu0 0.0
        %554 = vmatpush2.msra.mxu0 0.0
        %555 = vmatprep.mubr.f32.mxu0 0.0
        %556 = vmatmul.mubr.f32.gmra.mxu0 %v444
        %v557 = vpop.f32.mrf.mxu0
        %v558 = vadd.f32 0.0, %v557
        %v559 = vpop.f32.mrf.mxu0
        %v560 = vadd.f32 0.0, %v559
        %561 = vmatprep.mubr.f32.mxu0 0.0
        %562 = vmatmul.mubr.f32.gmra.mxu0 %v447
        %v563 = vpop.f32.mrf.mxu0
        %v564 = vadd.f32 0.0, %v563
        %v565 = vpop.f32.mrf.mxu0
        %v566 = vadd.f32 0.0, %v565
        %567 = vmatprep.mubr.f32.mxu0 0.0
        %568 = vmatmul.mubr.f32.gmra.mxu0 %v450
        %v569 = vpop.f32.mrf.mxu0
        %v570 = vadd.f32 0.0, %v569
        %v571 = vpop.f32.mrf.mxu0
        %v572 = vadd.f32 0.0, %v571
        %573 = vmatprep.mubr.f32.mxu0 0.0
        %574 = vmatmul.mubr.f32.gmra.mxu0 %v453
        %v575 = vpop.f32.mrf.mxu0
        %v576 = vadd.f32 0.0, %v575
        %v577 = vpop.f32.mrf.mxu0
        %v578 = vadd.f32 0.0, %v577
        %579 = vmatprep.mubr.f32.mxu0 0.0
        %580 = vmatmul.mubr.f32.gmra.mxu0 %v456
        %v581 = vpop.f32.mrf.mxu0
        %v582 = vadd.f32 0.0, %v581
        %v583 = vpop.f32.mrf.mxu0
        %v584 = vadd.f32 0.0, %v583
        %585 = vmatprep.mubr.f32.mxu0 0.0
        %586 = vmatmul.mubr.f32.gmra.mxu0 %v459
        %v587 = vpop.f32.mrf.mxu0
        %v588 = vadd.f32 0.0, %v587
        %v589 = vpop.f32.mrf.mxu0
        %v590 = vadd.f32 0.0, %v589
        %591 = vmatprep.mubr.f32.mxu0 0.0
        %592 = vmatmul.mubr.f32.gmra.mxu0 %v462
        %v593 = vpop.f32.mrf.mxu0
        %v594 = vadd.f32 0.0, %v593
        %v595 = vpop.f32.mrf.mxu0
        %v596 = vadd.f32 0.0, %v595
        %597 = vmatprep.mubr.f32.mxu0 0.0
        %598 = vmatmul.mubr.f32.gmra.mxu0 %v465
        %v599 = vpop.f32.mrf.mxu0
        %v600 = vadd.f32 0.0, %v599
        %v601 = vpop.f32.mrf.mxu0
        %v602 = vadd.f32 0.0, %v601
        %603 = vmatprep.mubr.f32.mxu0 0.0
        %604 = vmatmul.mubr.f32.gmra.mxu0 %v468
        %v605 = vpop.f32.mrf.mxu0
        %v606 = vadd.f32 0.0, %v605
        %v607 = vpop.f32.mrf.mxu0
        %v608 = vadd.f32 0.0, %v607
        %609 = vmatprep.mubr.f32.mxu0 0.0
        %610 = vmatmul.mubr.f32.gmra.mxu0 %v471
        %v611 = vpop.f32.mrf.mxu0
        %v612 = vadd.f32 0.0, %v611
        %v613 = vpop.f32.mrf.mxu0
        %v614 = vadd.f32 0.0, %v613
        %615 = vmatprep.mubr.f32.mxu0 0.0
        %616 = vmatmul.mubr.f32.gmra.mxu0 %v474
        %v617 = vpop.f32.mrf.mxu0
        %v618 = vadd.f32 0.0, %v617
        %v619 = vpop.f32.mrf.mxu0
        %v620 = vadd.f32 0.0, %v619
        %621 = vmatprep.mubr.f32.mxu0 0.0
        %622 = vmatmul.mubr.f32.gmra.mxu0 %v477
        %v623 = vpop.f32.mrf.mxu0
        %v624 = vadd.f32 0.0, %v623
        %v625 = vpop.f32.mrf.mxu0
        %v626 = vadd.f32 0.0, %v625
        %627 = vmatprep.mubr.f32.mxu0 0.0
        %628 = vmatmul.mubr.f32.gmra.mxu0 %v480
        %v629 = vpop.f32.mrf.mxu0
        %v630 = vadd.f32 0.0, %v629
        %v631 = vpop.f32.mrf.mxu0
        %v632 = vadd.f32 0.0, %v631
        %633 = vmatprep.mubr.f32.mxu0 0.0
        %634 = vmatmul.mubr.f32.gmra.mxu0 %v483
        %v635 = vpop.f32.mrf.mxu0
        %v636 = vadd.f32 0.0, %v635
        %v637 = vpop.f32.mrf.mxu0
        %v638 = vadd.f32 0.0, %v637
        %639 = vmatprep.mubr.f32.mxu0 0.0
        %640 = vmatmul.mubr.f32.gmra.mxu0 %v486
        %v641 = vpop.f32.mrf.mxu0
        %v642 = vadd.f32 0.0, %v641
        %v643 = vpop.f32.mrf.mxu0
        %v644 = vadd.f32 0.0, %v643
        %645 = vmatprep.mubr.f32.mxu0 0.0
        %646 = vmatmul.mubr.f32.gmra.mxu0 %v489
        %v647 = vpop.f32.mrf.mxu0
        %v648 = vadd.f32 0.0, %v647
        %v649 = vpop.f32.mrf.mxu0
        %v650 = vadd.f32 0.0, %v649
        %651 = vdwg.mxu0
        %v652 = vmul.f32 %v558, %v418
        %v653 = vmul.f32 %v560, %v419
        %v654 = vmul.f32 %v564, %v420
        %v655 = vmul.f32 %v566, %v421
        %v656 = vmul.f32 %v570, %v422
        %v657 = vmul.f32 %v572, %v423
        %v658 = vmul.f32 %v576, %v424
        %v659 = vmul.f32 %v578, %v425
        %v660 = vmul.f32 %v582, %v418
        %v661 = vmul.f32 %v584, %v419
        %v662 = vmul.f32 %v588, %v420
        %v663 = vmul.f32 %v590, %v421
        %v664 = vmul.f32 %v594, %v422
        %v665 = vmul.f32 %v596, %v423
        %v666 = vmul.f32 %v600, %v424
        %v667 = vmul.f32 %v602, %v425
        %v668 = vmul.f32 %v606, %v418
        %v669 = vmul.f32 %v608, %v419
        %v670 = vmul.f32 %v612, %v420
        %v671 = vmul.f32 %v614, %v421
        %v672 = vmul.f32 %v618, %v422
        %v673 = vmul.f32 %v620, %v423
        %v674 = vmul.f32 %v624, %v424
        %v675 = vmul.f32 %v626, %v425
        %v676 = vmul.f32 %v630, %v418
        %v677 = vmul.f32 %v632, %v419
        %v678 = vmul.f32 %v636, %v420
        %v679 = vmul.f32 %v638, %v421
        %v680 = vmul.f32 %v642, %v422
        %v681 = vmul.f32 %v644, %v423
        %v682 = vmul.f32 %v648, %v424
        %v683 = vmul.f32 %v650, %v425
        %v684 = vadd.f32 %v652, %v654
        %v685 = vadd.f32 %v684, %v656
        %v686 = vadd.f32 %v685, %v658
        %v687 = vrot.slane %v686, 4
        %v688 = vadd.f32 %v686, %v687
        %v689 = vrot.slane %v688, 2
        %v690 = vadd.f32 %v688, %v689
        %v691 = vrot.slane %v690, 1
        %v692 = vadd.f32 %v690, %v691
        %v693 = vadd.f32 %v653, %v655
        %v694 = vadd.f32 %v693, %v657
        %v695 = vadd.f32 %v694, %v659
        %v696 = vrot.slane %v695, 4
        %v697 = vadd.f32 %v695, %v696
        %v698 = vrot.slane %v697, 2
        %v699 = vadd.f32 %v697, %v698
        %v700 = vrot.slane %v699, 1
        %v701 = vadd.f32 %v699, %v700
        %v702 = vadd.f32 %v660, %v662
        %v703 = vadd.f32 %v702, %v664
        %v704 = vadd.f32 %v703, %v666
        %v705 = vrot.slane %v704, 4
        %v706 = vadd.f32 %v704, %v705
        %v707 = vrot.slane %v706, 2
        %v708 = vadd.f32 %v706, %v707
        %v709 = vrot.slane %v708, 1
        %v710 = vadd.f32 %v708, %v709
        %v711 = vadd.f32 %v661, %v663
        %v712 = vadd.f32 %v711, %v665
        %v713 = vadd.f32 %v712, %v667
        %v714 = vrot.slane %v713, 4
        %v715 = vadd.f32 %v713, %v714
        %v716 = vrot.slane %v715, 2
        %v717 = vadd.f32 %v715, %v716
        %v718 = vrot.slane %v717, 1
        %v719 = vadd.f32 %v717, %v718
        %v720 = vadd.f32 %v668, %v670
        %v721 = vadd.f32 %v720, %v672
        %v722 = vadd.f32 %v721, %v674
        %v723 = vrot.slane %v722, 4
        %v724 = vadd.f32 %v722, %v723
        %v725 = vrot.slane %v724, 2
        %v726 = vadd.f32 %v724, %v725
        %v727 = vrot.slane %v726, 1
        %v728 = vadd.f32 %v726, %v727
        %v729 = vadd.f32 %v669, %v671
        %v730 = vadd.f32 %v729, %v673
        %v731 = vadd.f32 %v730, %v675
        %v732 = vrot.slane %v731, 4
        %v733 = vadd.f32 %v731, %v732
        %v734 = vrot.slane %v733, 2
        %v735 = vadd.f32 %v733, %v734
        %v736 = vrot.slane %v735, 1
        %v737 = vadd.f32 %v735, %v736
        %v738 = vadd.f32 %v676, %v678
        %v739 = vadd.f32 %v738, %v680
        %v740 = vadd.f32 %v739, %v682
        %v741 = vrot.slane %v740, 4
        %v742 = vadd.f32 %v740, %v741
        %v743 = vrot.slane %v742, 2
        %v744 = vadd.f32 %v742, %v743
        %v745 = vrot.slane %v744, 1
        %v746 = vadd.f32 %v744, %v745
        %v747 = vadd.f32 %v677, %v679
        %v748 = vadd.f32 %v747, %v681
        %v749 = vadd.f32 %v748, %v683
        %v750 = vrot.slane %v749, 4
        %v751 = vadd.f32 %v749, %v750
        %v752 = vrot.slane %v751, 2
        %v753 = vadd.f32 %v751, %v752
        %v754 = vrot.slane %v753, 1
        %v755 = vadd.f32 %v753, %v754
        %v764 = vcombine.low %v692, %v701
        %v765 = vcombine.low %v710, %v719
        %v766 = vcombine.low %v728, %v737
        %v767 = vcombine.low %v746, %v755
        %v768 = vrot.slane %v765, 7
        %vm769 = vcmask 1041409
        %v770 = vsel %vm769, %v768, %v764
        %vm771 = vcmask 1045509
        %v772 = vsel %vm771, %v768, %v770
        %v773 = vrot.slane %v766, 6
        %vm774 = vcmask 1042434
        %v775 = vsel %vm774, %v773, %v772
        %vm776 = vcmask 1046534
        %v777 = vsel %vm776, %v773, %v775
        %v778 = vrot.slane %v767, 5
        %vm779 = vcmask 1043459
        %v780 = vsel %vm779, %v778, %v777
        %vm781 = vcmask 1047559
        %v782 = vsel %vm781, %v778, %v780
        %784 = vst [vmem:[%s215] sm:$0xff] %v782
        %s785 = sand.u32 %s131, 1
        %s786 = scalar_lea.sflag [#allocation3], %s785
        %s787 = sand.u32 %s131, 1
        %s788 = smul.addr %s787, 8
        %s789 = scalar_lea.vmem [#allocation2], %s788
        // Predicated region
        $region37: #{tpu_custom_call.1} parent=35 // pred_check
          %p790 = pneg %p141
        $region38: #{tpu_custom_call.1} parent=35 // pred_check_branch
          %792 = sbr.rel (%p790) target = $region40
        $region39: #{tpu_custom_call.1} parent=35 // pred_region
          %s793 = smul.u32 2, %s23
          %s795 = ssub.s32 128, 128
          %796 = vsyncadd %s786, %s795
          %s797 = smul.addr %s22, 2
          %s798 = sadd.s32 %s793, %s797
          %s799 = smul.addr %s798, 64
          %s800 = scalar_lea.hbm %s4, %s799
          %s802 = sshll.u32 %s789, 4
          %s803 = int_to_ptr.vmem [resolvable:$true] %s802
          %805 = dma.vmem_to_hbm [thread:$0]  %s803, 128, %s800, %s786
        $region40: #{tpu_custom_call.1} parent=35 // pred_fallthru
          _
      $region36: #{tpu_custom_call.1} parent=5 // pred_fallthru
        _
      %p806 = scmp.le.s32.totalorder 2, %s13
      // Predicated region
      $region41: #{tpu_custom_call.1} parent=5 // pred_check
        %p807 = pneg %p806
      $region42: #{tpu_custom_call.1} parent=5 // pred_check_branch
        %809 = sbr.rel (%p807) target = $region44
      $region43: #{tpu_custom_call.1} parent=5 // pred_region
        %s810 = ssub.s32 %s13, 2
        // Predicated region
        $region45: #{tpu_custom_call.1} parent=43 // pred_check
          %p811 = pneg %p147
        $region46: #{tpu_custom_call.1} parent=43 // pred_check_branch
          %813 = sbr.rel (%p811) target = $region48
        $region47: #{tpu_custom_call.1} parent=43 // pred_region
          %s814 = sand.u32 %s132, 1
          %s815 = scalar_lea.sflag [#allocation3], %s814
          %s816 = sand.u32 %s132, 1
          %s817 = smul.addr %s816, 8
          %s818 = scalar_lea.vmem [#allocation2], %s817
          %819 = dma.done %s815, 128
        $region48: #{tpu_custom_call.1} parent=43 // pred_fallthru
          _
      $region44: #{tpu_custom_call.1} parent=5 // pred_fallthru
        _
    $region6: #{tpu_custom_call.1} parent=1 // loop_footer
      %s17 = sadd.s32 1, %s13
    $region7: #{tpu_custom_call.1} parent=1 // loop_footer_branch
      %12 = sbr.rel target = $region3
    $region8: #{tpu_custom_call.1} parent=1 // loop_exit
      _
    %820 = vsyncpa [#allocation3], 1
    %s821 = scalar_lea.sflag [#allocation3], 1
    %822 = vsyncpa %s821, 1

</llo_original>
